<compile_context>
chip_gen: v5e
topology: v5e:2x2
jax: 0.10.0
libtpu: 0.0.40
codegen_flags: <defaults>
</compile_context>

<pallas_src>
import functools

import jax
import jax.numpy as jnp
from jax import lax
from jax.experimental import pallas as pl
from jax.experimental.pallas import tpu as pltpu


def _round_up(n, m):
    return ((n + m - 1) // m) * m


def _largest_divisor_leq(n, cap):
    for c in range(min(n, cap), 0, -1):
        if n % c == 0:
            return c
    return 1


def _pad2(a, rows, cols):
    return jnp.pad(a, ((0, rows - a.shape[0]), (0, cols - a.shape[1])))


def _pad1(a, n):
    return jnp.pad(a, (0, n - a.shape[0]))


# ---------------------------------------------------------------------------
# Intermediate RNN layer kernel.
# Activations are time-major and flattened: rows [t*B_pad : (t+1)*B_pad) of the
# 2-D (T*B_pad, D) array hold timestep t.  One grid step processes Tt timesteps.
# ---------------------------------------------------------------------------
def _rnn_seq_kernel(x_ref, wih_t_ref, whh_t_ref, b_ref, y_ref, h_ref, pre_ref):
    tb = pl.program_id(0)
    b_pad = h_ref.shape[0]
    tt = pre_ref.shape[0] // b_pad
    mxu_dtype = whh_t_ref.dtype

    @pl.when(tb == 0)
    def _init():
        h_ref[...] = jnp.zeros_like(h_ref)  # h0 = zeros (matches torch.zeros)

    # Block input projection: (Tt*B, Din) @ (Din, H) + bias, one MXU matmul for
    # the whole timestep block, f32 accumulation.
    pre_ref[...] = (
        jnp.dot(x_ref[...].astype(mxu_dtype), wih_t_ref[...],
                preferred_element_type=jnp.float32)
        + b_ref[...]
    )

    whh_t = whh_t_ref[...]  # resident recurrent weights (hoisted out of the loop)

    def step(t, h):
        row = pl.multiple_of(t * b_pad, b_pad)
        h_new = jnp.tanh(
            jnp.dot(h.astype(mxu_dtype), whh_t, preferred_element_type=jnp.float32)
            + pre_ref[pl.ds(row, b_pad), :]
        )
        y_ref[pl.ds(row, b_pad), :] = h_new.astype(y_ref.dtype)
        return h_new

    h_ref[...] = lax.fori_loop(0, tt, step, h_ref[...], unroll=True)


# ---------------------------------------------------------------------------
# Final RNN layer kernel with the Linear head fused in.
# No sequence output is written; only out = h_{T-1} @ W_fc^T + b_fc.
# ---------------------------------------------------------------------------
def _rnn_final_fc_kernel(x_ref, wih_t_ref, whh_t_ref, b_ref, wfc_t_ref, bfc_ref,
                         o_ref, h_ref, pre_ref):
    tb = pl.program_id(0)
    b_pad = h_ref.shape[0]
    tt = pre_ref.shape[0] // b_pad
    mxu_dtype = whh_t_ref.dtype

    @pl.when(tb == 0)
    def _init():
        h_ref[...] = jnp.zeros_like(h_ref)

    pre_ref[...] = (
        jnp.dot(x_ref[...].astype(mxu_dtype), wih_t_ref[...],
                preferred_element_type=jnp.float32)
        + b_ref[...]
    )

    whh_t = whh_t_ref[...]

    def step(t, h):
        row = pl.multiple_of(t * b_pad, b_pad)
        return jnp.tanh(
            jnp.dot(h.astype(mxu_dtype), whh_t, preferred_element_type=jnp.float32)
            + pre_ref[pl.ds(row, b_pad), :]
        )

    h_last = lax.fori_loop(0, tt, step, h_ref[...], unroll=True)
    h_ref[...] = h_last

    @pl.when(tb == pl.num_programs(0) - 1)
    def _fc():
        o_ref[...] = (
            jnp.dot(h_last.astype(mxu_dtype), wfc_t_ref[...],
                    preferred_element_type=jnp.float32)
            + bfc_ref[...]
        )


# ---------------------------------------------------------------------------
# Wrappers
# ---------------------------------------------------------------------------
def rnn_layer_seq(x2d, wih_t, whh_t, b, b_pad, tt):
    """One stacked-RNN layer. x2d: (T*B_pad, Din) -> (T*B_pad, H_pad), f32."""
    tb_rows, d_in = x2d.shape
    h_pad = whh_t.shape[1]
    n_t = tb_rows // b_pad
    blk_rows = tt * b_pad
    return pl.pallas_call(
        _rnn_seq_kernel,
        out_shape=jax.ShapeDtypeStruct((tb_rows, h_pad), jnp.float32),
        grid_spec=pltpu.PrefetchScalarGridSpec(
            num_scalar_prefetch=0,
            grid=(n_t // tt,),
            in_specs=[
                pl.BlockSpec((blk_rows, d_in), lambda i: (i, 0)),   # x block (Tt steps)
                pl.BlockSpec((d_in, h_pad), lambda i: (0, 0)),      # W_ih^T (resident)
                pl.BlockSpec((h_pad, h_pad), lambda i: (0, 0)),     # W_hh^T (resident)
                pl.BlockSpec((1, h_pad), lambda i: (0, 0)),         # b_ih + b_hh
            ],
            out_specs=pl.BlockSpec((blk_rows, h_pad), lambda i: (i, 0)),
            scratch_shapes=[
                pltpu.VMEM((b_pad, h_pad), jnp.float32),     # hidden-state carry
                pltpu.VMEM((blk_rows, h_pad), jnp.float32),  # block input projection
            ],
        ),
        compiler_params=pltpu.CompilerParams(
            dimension_semantics=("arbitrary",)),   # time is sequential
    )(x2d, wih_t, whh_t, b)


def rnn_layer_final_fc(x2d, wih_t, whh_t, b, wfc_t, bfc, b_pad, tt):
    """Last RNN layer with fused Linear head: -> (B_pad, O_pad), f32."""
    tb_rows, d_in = x2d.shape
    h_pad = whh_t.shape[1]
    o_pad = wfc_t.shape[1]
    n_t = tb_rows // b_pad
    blk_rows = tt * b_pad
    return pl.pallas_call(
        _rnn_final_fc_kernel,
        out_shape=jax.ShapeDtypeStruct((b_pad, o_pad), jnp.float32),
        grid_spec=pltpu.PrefetchScalarGridSpec(
            num_scalar_prefetch=0,
            grid=(n_t // tt,),
            in_specs=[
                pl.BlockSpec((blk_rows, d_in), lambda i: (i, 0)),
                pl.BlockSpec((d_in, h_pad), lambda i: (0, 0)),
                pl.BlockSpec((h_pad, h_pad), lambda i: (0, 0)),
                pl.BlockSpec((1, h_pad), lambda i: (0, 0)),
                pl.BlockSpec((h_pad, o_pad), lambda i: (0, 0)),     # W_fc^T (resident)
                pl.BlockSpec((1, o_pad), lambda i: (0, 0)),         # b_fc
            ],
            out_specs=pl.BlockSpec((b_pad, o_pad), lambda i: (0, 0)),  # written at last step
            scratch_shapes=[
                pltpu.VMEM((b_pad, h_pad), jnp.float32),
                pltpu.VMEM((blk_rows, h_pad), jnp.float32),
            ],
        ),
        compiler_params=pltpu.CompilerParams(
            dimension_semantics=("arbitrary",)),
    )(x2d, wih_t, whh_t, b, wfc_t, bfc)


# ---------------------------------------------------------------------------
# Full forward: num_layers stacked RNN layers, FC fused into the last one.
# ---------------------------------------------------------------------------
@functools.partial(jax.jit, static_argnames=("num_layers", "mxu_dtype", "tt_max"))
def rnn_net_forward(x, params, num_layers, mxu_dtype=jnp.bfloat16, tt_max=32):
    B, T, D = x.shape
    H = params["rnn_l0"][0].shape[0]
    O = params["fc"][0].shape[0]

    b_pad = _round_up(B, 8)      # sublane alignment
    h_pad = _round_up(H, 128)    # lane alignment (zero-padded hidden stays zero)
    o_pad = _round_up(O, 128)
    tt = _largest_divisor_leq(T, tt_max)   # timesteps per grid step

    # One layout transform for the whole stack: (B,T,D) -> time-major, pad batch,
    # flatten to (T*B_pad, D).  No per-layer transposes.
    x_tm = jnp.transpose(x.astype(jnp.float32), (1, 0, 2))        # (T, B, D)
    x_tm = jnp.pad(x_tm, ((0, 0), (0, b_pad - B), (0, 0)))        # (T, B_pad, D)
    h_seq = x_tm.reshape(T * b_pad, D)                            # (T*B_pad, D)

    out_pad = None
    for layer in range(num_layers):
        w_ih, w_hh, b_ih, b_hh = params[f"rnn_l{layer}"]
        d_in = h_seq.shape[-1]                                    # D or h_pad
        wih_t = _pad2(w_ih, h_pad, d_in).T.astype(mxu_dtype)      # (d_in, h_pad)
        whh_t = _pad2(w_hh, h_pad, h_pad).T.astype(mxu_dtype)     # (h_pad, h_pad)
        b = _pad1((b_ih + b_hh).astype(jnp.float32), h_pad).reshape(1, h_pad)

        if layer < num_layers - 1:
            h_seq = rnn_layer_seq(h_seq, wih_t, whh_t, b, b_pad, tt)
        else:
            w_fc, b_fc = params["fc"]
            wfc_t = _pad2(w_fc, o_pad, h_pad).T.astype(mxu_dtype)  # (h_pad, o_pad)
            bfc = _pad1(b_fc.astype(jnp.float32), o_pad).reshape(1, o_pad)
            out_pad = rnn_layer_final_fc(h_seq, wih_t, whh_t, b, wfc_t, bfc,
                                         b_pad, tt)
    return out_pad[:B, :O]


# ---------------------------------------------------------------------------
# Deterministic parameter init (nn.RNN / nn.Linear shapes, uniform(-1/sqrt(H), ...)).
# ---------------------------------------------------------------------------
def init_params(key, input_dim, hidden_dim, num_layers, output_dim):
    params = {}
    bound = 1.0 / jnp.sqrt(hidden_dim)
    for layer in range(num_layers):
        d_in = input_dim if layer == 0 else hidden_dim
        key, k1, k2, k3, k4 = jax.random.split(key, 5)
        params[f"rnn_l{layer}"] = (
            jax.random.uniform(k1, (hidden_dim, d_in), jnp.float32, -bound, bound),
            jax.random.uniform(k2, (hidden_dim, hidden_dim), jnp.float32, -bound, bound),
            jax.random.uniform(k3, (hidden_dim,), jnp.float32, -bound, bound),
            jax.random.uniform(k4, (hidden_dim,), jnp.float32, -bound, bound),
        )
    key, k1, k2 = jax.random.split(key, 3)
    params["fc"] = (
        jax.random.uniform(k1, (output_dim, hidden_dim), jnp.float32, -bound, bound),
        jax.random.uniform(k2, (output_dim,), jnp.float32, -bound, bound),
    )
    return params


# Pure-JAX reference (mirrors the PyTorch module's semantics).
def ref_forward(x, params, num_layers):
    h_seq = x
    B, T, _ = x.shape
    for layer in range(num_layers):
        w_ih, w_hh, b_ih, b_hh = params[f"rnn_l{layer}"]
        H = w_ih.shape[0]
        h = jnp.zeros((B, H), jnp.float32)
        outs = []
        for t in range(T):
            h = jnp.tanh(h_seq[:, t, :] @ w_ih.T + b_ih + h @ w_hh.T + b_hh)
            outs.append(h)
        h_seq = jnp.stack(outs, axis=1)
    w_fc, b_fc = params["fc"]
    return h_seq[:, -1, :] @ w_fc.T + b_fc


if __name__ == "__main__":
    # Small shapes consistent with the module's forward: x is (batch, seq, input_dim)
    batch, seq = 2, 8
    input_dim, hidden_dim, num_layers, output_dim = 4, 32, 2, 8

    key = jax.random.PRNGKey(0)
    key, xk, pk = jax.random.split(key, 3)
    x = jax.random.normal(xk, (batch, seq, input_dim), jnp.float32)
    params = init_params(pk, input_dim, hidden_dim, num_layers, output_dim)

    expected = ref_forward(x, params, num_layers)

    # Exact-semantics config: f32 MXU operands.
    out_f32 = jax.block_until_ready(
        rnn_net_forward(x, params, num_layers, mxu_dtype=jnp.float32))
    assert out_f32.shape == (batch, output_dim)
    assert jnp.allclose(out_f32, expected, atol=1e-3, rtol=1e-3)

    # Perf config (v6e/v7x): bf16 MXU operands, f32 accumulation / tanh / carry.
    out_bf16 = jax.block_until_ready(
        rnn_net_forward(x, params, num_layers, mxu_dtype=jnp.bfloat16))
    assert out_bf16.shape == (batch, output_dim)
    assert jnp.allclose(out_bf16, expected, atol=2e-2, rtol=2e-2)

    print("KERNEL_OK")
</pallas_src>

<mosaic_0001>
module attributes {stable_mosaic.version = 11 : i64} {
  func.func @_rnn_seq_kernel(%arg0: i32, %arg1: memref<64x4xf32, #tpu.memory_space<vmem>>, %arg2: memref<4x128xf32, #tpu.memory_space<vmem>>, %arg3: memref<128x128xf32, #tpu.memory_space<vmem>>, %arg4: memref<1x128xf32, #tpu.memory_space<vmem>>, %arg5: memref<64x128xf32, #tpu.memory_space<vmem>>, %arg6: memref<8x128xf32, #tpu.memory_space<vmem>>, %arg7: memref<64x128xf32, #tpu.memory_space<vmem>>) attributes {dimension_semantics = [#tpu.dimension_semantics<arbitrary>], iteration_bounds = array<i64: 1>, scalar_prefetch = 0 : i64, scratch_operands = 2 : i64, tpu.core_type = #tpu.core_type<tc>, window_params = [{transform_indices = @transform_0, window_bounds = array<i64: 64, 4>}, {pipeline_mode = #tpu.pipeline_mode<synchronous>, transform_indices = @transform_1, window_bounds = array<i64: 4, 128>}, {pipeline_mode = #tpu.pipeline_mode<synchronous>, transform_indices = @transform_2, window_bounds = array<i64: 128, 128>}, {pipeline_mode = #tpu.pipeline_mode<synchronous>, transform_indices = @transform_3, window_bounds = array<i64: 1, 128>}, {transform_indices = @transform_4, window_bounds = array<i64: 64, 128>}]} {
    %c0_i32 = arith.constant 0 : i32
    %0 = arith.cmpi eq, %arg0, %c0_i32 : i32
    %1 = arith.extui %0 : i1 to i32
    %c0_i32_0 = arith.constant 0 : i32
    %2 = arith.cmpi ne, %1, %c0_i32_0 : i32
    scf.if %2 {
      %cst_47 = arith.constant 0.000000e+00 : f32
      %85 = vector.broadcast %cst_47 : f32 to vector<8x128xf32>
      %c0_48 = arith.constant 0 : index
      %c0_49 = arith.constant 0 : index
      %86 = vector.load %arg6[%c0_48, %c0_49] : memref<8x128xf32, #tpu.memory_space<vmem>>, vector<8x128xf32>
      tpu.vector_store %arg6[%c0_48, %c0_49], %85 {strides = array<i32>} : memref<8x128xf32, #tpu.memory_space<vmem>>, vector<8x128xf32>,
    } else {
    }
    %c0 = arith.constant 0 : index
    %c0_1 = arith.constant 0 : index
    %3 = vector.load %arg1[%c0, %c0_1] : memref<64x4xf32, #tpu.memory_space<vmem>>, vector<64x4xf32>
    %c0_2 = arith.constant 0 : index
    %c0_3 = arith.constant 0 : index
    %4 = vector.load %arg2[%c0_2, %c0_3] : memref<4x128xf32, #tpu.memory_space<vmem>>, vector<4x128xf32>
    %cst = arith.constant dense<0.000000e+00> : vector<64x128xf32>
    %5 = tpu.matmul %3, %4, %cst {dimension_numbers = #tpu.dot_dimension_numbers<[1], [0], [0], [1], [0, 0, 1, 1], [], []>} : vector<64x4xf32>, vector<4x128xf32>, vector<64x128xf32> -> vector<64x128xf32>
    %c0_4 = arith.constant 0 : index
    %c0_5 = arith.constant 0 : index
    %6 = vector.load %arg4[%c0_4, %c0_5] : memref<1x128xf32, #tpu.memory_space<vmem>>, vector<1x128xf32>
    %7 = vector.broadcast %6 : vector<1x128xf32> to vector<64x128xf32>
    %8 = arith.addf %5, %7 : vector<64x128xf32>
    %c0_6 = arith.constant 0 : index
    %c0_7 = arith.constant 0 : index
    %9 = vector.load %arg7[%c0_6, %c0_7] : memref<64x128xf32, #tpu.memory_space<vmem>>, vector<64x128xf32>
    tpu.vector_store %arg7[%c0_6, %c0_7], %8 {strides = array<i32>} : memref<64x128xf32, #tpu.memory_space<vmem>>, vector<64x128xf32>,
    %c0_8 = arith.constant 0 : index
    %c0_9 = arith.constant 0 : index
    %10 = vector.load %arg3[%c0_8, %c0_9] : memref<128x128xf32, #tpu.memory_space<vmem>>, vector<128x128xf32>
    %c0_10 = arith.constant 0 : index
    %c0_11 = arith.constant 0 : index
    %11 = vector.load %arg6[%c0_10, %c0_11] : memref<8x128xf32, #tpu.memory_space<vmem>>, vector<8x128xf32>
    %c0_i32_12 = arith.constant 0 : i32
    %c8_i32 = arith.constant 8 : i32
    %12 = arith.muli %c0_i32_12, %c8_i32 : i32
    %13 = tpu.assume_multiple %12, 8 : i32
    %cst_13 = arith.constant dense<0.000000e+00> : vector<8x128xf32>
    %14 = tpu.matmul %11, %10, %cst_13 {dimension_numbers = #tpu.dot_dimension_numbers<[1], [0], [0], [1], [0, 0, 1, 1], [], []>} : vector<8x128xf32>, vector<128x128xf32>, vector<8x128xf32> -> vector<8x128xf32>
    %15 = arith.index_cast %13 : i32 to index
    %c0_14 = arith.constant 0 : index
    %16 = vector.load %arg7[%15, %c0_14] : memref<64x128xf32, #tpu.memory_space<vmem>>, vector<8x128xf32>
    %17 = arith.addf %14, %16 : vector<8x128xf32>
    %18 = math.tanh %17 : vector<8x128xf32>
    %19 = arith.index_cast %13 : i32 to index
    %c0_15 = arith.constant 0 : index
    %20 = vector.load %arg5[%19, %c0_15] : memref<64x128xf32, #tpu.memory_space<vmem>>, vector<8x128xf32>
    tpu.vector_store %arg5[%19, %c0_15], %18 {strides = array<i32>} : memref<64x128xf32, #tpu.memory_space<vmem>>, vector<8x128xf32>,
    %c1_i32 = arith.constant 1 : i32
    %c8_i32_16 = arith.constant 8 : i32
    %21 = arith.muli %c1_i32, %c8_i32_16 : i32
    %22 = tpu.assume_multiple %21, 8 : i32
    %cst_17 = arith.constant dense<0.000000e+00> : vector<8x128xf32>
    %23 = tpu.matmul %18, %10, %cst_17 {dimension_numbers = #tpu.dot_dimension_numbers<[1], [0], [0], [1], [0, 0, 1, 1], [], []>} : vector<8x128xf32>, vector<128x128xf32>, vector<8x128xf32> -> vector<8x128xf32>
    %24 = arith.index_cast %22 : i32 to index
    %c0_18 = arith.constant 0 : index
    %25 = vector.load %arg7[%24, %c0_18] : memref<64x128xf32, #tpu.memory_space<vmem>>, vector<8x128xf32>
    %26 = arith.addf %23, %25 : vector<8x128xf32>
    %27 = math.tanh %26 : vector<8x128xf32>
    %28 = arith.index_cast %22 : i32 to index
    %c0_19 = arith.constant 0 : index
    %29 = vector.load %arg5[%28, %c0_19] : memref<64x128xf32, #tpu.memory_space<vmem>>, vector<8x128xf32>
    tpu.vector_store %arg5[%28, %c0_19], %27 {strides = array<i32>} : memref<64x128xf32, #tpu.memory_space<vmem>>, vector<8x128xf32>,
    %c2_i32 = arith.constant 2 : i32
    %c8_i32_20 = arith.constant 8 : i32
    %30 = arith.muli %c2_i32, %c8_i32_20 : i32
    %31 = tpu.assume_multiple %30, 8 : i32
    %cst_21 = arith.constant dense<0.000000e+00> : vector<8x128xf32>
    %32 = tpu.matmul %27, %10, %cst_21 {dimension_numbers = #tpu.dot_dimension_numbers<[1], [0], [0], [1], [0, 0, 1, 1], [], []>} : vector<8x128xf32>, vector<128x128xf32>, vector<8x128xf32> -> vector<8x128xf32>
    %33 = arith.index_cast %31 : i32 to index
    %c0_22 = arith.constant 0 : index
    %34 = vector.load %arg7[%33, %c0_22] : memref<64x128xf32, #tpu.memory_space<vmem>>, vector<8x128xf32>
    %35 = arith.addf %32, %34 : vector<8x128xf32>
    %36 = math.tanh %35 : vector<8x128xf32>
    %37 = arith.index_cast %31 : i32 to index
    %c0_23 = arith.constant 0 : index
    %38 = vector.load %arg5[%37, %c0_23] : memref<64x128xf32, #tpu.memory_space<vmem>>, vector<8x128xf32>
    tpu.vector_store %arg5[%37, %c0_23], %36 {strides = array<i32>} : memref<64x128xf32, #tpu.memory_space<vmem>>, vector<8x128xf32>,
    %c3_i32 = arith.constant 3 : i32
    %c8_i32_24 = arith.constant 8 : i32
    %39 = arith.muli %c3_i32, %c8_i32_24 : i32
    %40 = tpu.assume_multiple %39, 8 : i32
    %cst_25 = arith.constant dense<0.000000e+00> : vector<8x128xf32>
    %41 = tpu.matmul %36, %10, %cst_25 {dimension_numbers = #tpu.dot_dimension_numbers<[1], [0], [0], [1], [0, 0, 1, 1], [], []>} : vector<8x128xf32>, vector<128x128xf32>, vector<8x128xf32> -> vector<8x128xf32>
    %42 = arith.index_cast %40 : i32 to index
    %c0_26 = arith.constant 0 : index
    %43 = vector.load %arg7[%42, %c0_26] : memref<64x128xf32, #tpu.memory_space<vmem>>, vector<8x128xf32>
    %44 = arith.addf %41, %43 : vector<8x128xf32>
    %45 = math.tanh %44 : vector<8x128xf32>
    %46 = arith.index_cast %40 : i32 to index
    %c0_27 = arith.constant 0 : index
    %47 = vector.load %arg5[%46, %c0_27] : memref<64x128xf32, #tpu.memory_space<vmem>>, vector<8x128xf32>
    tpu.vector_store %arg5[%46, %c0_27], %45 {strides = array<i32>} : memref<64x128xf32, #tpu.memory_space<vmem>>, vector<8x128xf32>,
    %c4_i32 = arith.constant 4 : i32
    %c8_i32_28 = arith.constant 8 : i32
    %48 = arith.muli %c4_i32, %c8_i32_28 : i32
    %49 = tpu.assume_multiple %48, 8 : i32
    %cst_29 = arith.constant dense<0.000000e+00> : vector<8x128xf32>
    %50 = tpu.matmul %45, %10, %cst_29 {dimension_numbers = #tpu.dot_dimension_numbers<[1], [0], [0], [1], [0, 0, 1, 1], [], []>} : vector<8x128xf32>, vector<128x128xf32>, vector<8x128xf32> -> vector<8x128xf32>
    %51 = arith.index_cast %49 : i32 to index
    %c0_30 = arith.constant 0 : index
    %52 = vector.load %arg7[%51, %c0_30] : memref<64x128xf32, #tpu.memory_space<vmem>>, vector<8x128xf32>
    %53 = arith.addf %50, %52 : vector<8x128xf32>
    %54 = math.tanh %53 : vector<8x128xf32>
    %55 = arith.index_cast %49 : i32 to index
    %c0_31 = arith.constant 0 : index
    %56 = vector.load %arg5[%55, %c0_31] : memref<64x128xf32, #tpu.memory_space<vmem>>, vector<8x128xf32>
    tpu.vector_store %arg5[%55, %c0_31], %54 {strides = array<i32>} : memref<64x128xf32, #tpu.memory_space<vmem>>, vector<8x128xf32>,
    %c5_i32 = arith.constant 5 : i32
    %c8_i32_32 = arith.constant 8 : i32
    %57 = arith.muli %c5_i32, %c8_i32_32 : i32
    %58 = tpu.assume_multiple %57, 8 : i32
    %cst_33 = arith.constant dense<0.000000e+00> : vector<8x128xf32>
    %59 = tpu.matmul %54, %10, %cst_33 {dimension_numbers = #tpu.dot_dimension_numbers<[1], [0], [0], [1], [0, 0, 1, 1], [], []>} : vector<8x128xf32>, vector<128x128xf32>, vector<8x128xf32> -> vector<8x128xf32>
    %60 = arith.index_cast %58 : i32 to index
    %c0_34 = arith.constant 0 : index
    %61 = vector.load %arg7[%60, %c0_34] : memref<64x128xf32, #tpu.memory_space<vmem>>, vector<8x128xf32>
    %62 = arith.addf %59, %61 : vector<8x128xf32>
    %63 = math.tanh %62 : vector<8x128xf32>
    %64 = arith.index_cast %58 : i32 to index
    %c0_35 = arith.constant 0 : index
    %65 = vector.load %arg5[%64, %c0_35] : memref<64x128xf32, #tpu.memory_space<vmem>>, vector<8x128xf32>
    tpu.vector_store %arg5[%64, %c0_35], %63 {strides = array<i32>} : memref<64x128xf32, #tpu.memory_space<vmem>>, vector<8x128xf32>,
    %c6_i32 = arith.constant 6 : i32
    %c8_i32_36 = arith.constant 8 : i32
    %66 = arith.muli %c6_i32, %c8_i32_36 : i32
    %67 = tpu.assume_multiple %66, 8 : i32
    %cst_37 = arith.constant dense<0.000000e+00> : vector<8x128xf32>
    %68 = tpu.matmul %63, %10, %cst_37 {dimension_numbers = #tpu.dot_dimension_numbers<[1], [0], [0], [1], [0, 0, 1, 1], [], []>} : vector<8x128xf32>, vector<128x128xf32>, vector<8x128xf32> -> vector<8x128xf32>
    %69 = arith.index_cast %67 : i32 to index
    %c0_38 = arith.constant 0 : index
    %70 = vector.load %arg7[%69, %c0_38] : memref<64x128xf32, #tpu.memory_space<vmem>>, vector<8x128xf32>
    %71 = arith.addf %68, %70 : vector<8x128xf32>
    %72 = math.tanh %71 : vector<8x128xf32>
    %73 = arith.index_cast %67 : i32 to index
    %c0_39 = arith.constant 0 : index
    %74 = vector.load %arg5[%73, %c0_39] : memref<64x128xf32, #tpu.memory_space<vmem>>, vector<8x128xf32>
    tpu.vector_store %arg5[%73, %c0_39], %72 {strides = array<i32>} : memref<64x128xf32, #tpu.memory_space<vmem>>, vector<8x128xf32>,
    %c7_i32 = arith.constant 7 : i32
    %c8_i32_40 = arith.constant 8 : i32
    %75 = arith.muli %c7_i32, %c8_i32_40 : i32
    %76 = tpu.assume_multiple %75, 8 : i32
    %cst_41 = arith.constant dense<0.000000e+00> : vector<8x128xf32>
    %77 = tpu.matmul %72, %10, %cst_41 {dimension_numbers = #tpu.dot_dimension_numbers<[1], [0], [0], [1], [0, 0, 1, 1], [], []>} : vector<8x128xf32>, vector<128x128xf32>, vector<8x128xf32> -> vector<8x128xf32>
    %78 = arith.index_cast %76 : i32 to index
    %c0_42 = arith.constant 0 : index
    %79 = vector.load %arg7[%78, %c0_42] : memref<64x128xf32, #tpu.memory_space<vmem>>, vector<8x128xf32>
    %80 = arith.addf %77, %79 : vector<8x128xf32>
    %81 = math.tanh %80 : vector<8x128xf32>
    %82 = arith.index_cast %76 : i32 to index
    %c0_43 = arith.constant 0 : index
    %83 = vector.load %arg5[%82, %c0_43] : memref<64x128xf32, #tpu.memory_space<vmem>>, vector<8x128xf32>
    tpu.vector_store %arg5[%82, %c0_43], %81 {strides = array<i32>} : memref<64x128xf32, #tpu.memory_space<vmem>>, vector<8x128xf32>,
    %c8_i32_44 = arith.constant 8 : i32
    %c0_45 = arith.constant 0 : index
    %c0_46 = arith.constant 0 : index
    %84 = vector.load %arg6[%c0_45, %c0_46] : memref<8x128xf32, #tpu.memory_space<vmem>>, vector<8x128xf32>
    tpu.vector_store %arg6[%c0_45, %c0_46], %81 {strides = array<i32>} : memref<8x128xf32, #tpu.memory_space<vmem>>, vector<8x128xf32>,
    return
  }
  func.func @transform_0(%arg0: i32) -> (i32, i32) {
    %c0_i32 = arith.constant 0 : i32
    %c0_i32_0 = arith.constant 0 : i32
    return %arg0, %c0_i32 : i32, i32
  }
  func.func @transform_1(%arg0: i32) -> (i32, i32) {
    %c0_i32 = arith.constant 0 : i32
    %c0_i32_0 = arith.constant 0 : i32
    %c0_i32_1 = arith.constant 0 : i32
    return %c0_i32, %c0_i32_0 : i32, i32
  }
  func.func @transform_2(%arg0: i32) -> (i32, i32) {
    %c0_i32 = arith.constant 0 : i32
    %c0_i32_0 = arith.constant 0 : i32
    %c0_i32_1 = arith.constant 0 : i32
    return %c0_i32, %c0_i32_0 : i32, i32
  }
  func.func @transform_3(%arg0: i32) -> (i32, i32) {
    %c0_i32 = arith.constant 0 : i32
    %c0_i32_0 = arith.constant 0 : i32
    %c0_i32_1 = arith.constant 0 : i32
    return %c0_i32, %c0_i32_0 : i32, i32
  }
  func.func @transform_4(%arg0: i32) -> (i32, i32) {
    %c0_i32 = arith.constant 0 : i32
    %c0_i32_0 = arith.constant 0 : i32
    return %arg0, %c0_i32 : i32, i32
  }
}

module attributes {stable_mosaic.version = 11 : i64} {
  func.func @_rnn_final_fc_kernel(%arg0: i32, %arg1: memref<64x128xf32, #tpu.memory_space<vmem>>, %arg2: memref<128x128xf32, #tpu.memory_space<vmem>>, %arg3: memref<128x128xf32, #tpu.memory_space<vmem>>, %arg4: memref<1x128xf32, #tpu.memory_space<vmem>>, %arg5: memref<128x128xf32, #tpu.memory_space<vmem>>, %arg6: memref<1x128xf32, #tpu.memory_space<vmem>>, %arg7: memref<8x128xf32, #tpu.memory_space<vmem>>, %arg8: memref<8x128xf32, #tpu.memory_space<vmem>>, %arg9: memref<64x128xf32, #tpu.memory_space<vmem>>) attributes {dimension_semantics = [#tpu.dimension_semantics<arbitrary>], iteration_bounds = array<i64: 1>, scalar_prefetch = 0 : i64, scratch_operands = 2 : i64, tpu.core_type = #tpu.core_type<tc>, window_params = [{transform_indices = @transform_0, window_bounds = array<i64: 64, 128>}, {pipeline_mode = #tpu.pipeline_mode<synchronous>, transform_indices = @transform_1, window_bounds = array<i64: 128, 128>}, {pipeline_mode = #tpu.pipeline_mode<synchronous>, transform_indices = @transform_2, window_bounds = array<i64: 128, 128>}, {pipeline_mode = #tpu.pipeline_mode<synchronous>, transform_indices = @transform_3, window_bounds = array<i64: 1, 128>}, {pipeline_mode = #tpu.pipeline_mode<synchronous>, transform_indices = @transform_4, window_bounds = array<i64: 128, 128>}, {pipeline_mode = #tpu.pipeline_mode<synchronous>, transform_indices = @transform_5, window_bounds = array<i64: 1, 128>}, {pipeline_mode = #tpu.pipeline_mode<synchronous>, transform_indices = @transform_6, window_bounds = array<i64: 8, 128>}]} {
    %c0_i32 = arith.constant 0 : i32
    %0 = arith.cmpi eq, %arg0, %c0_i32 : i32
    %1 = arith.extui %0 : i1 to i32
    %c0_i32_0 = arith.constant 0 : i32
    %2 = arith.cmpi ne, %1, %c0_i32_0 : i32
    scf.if %2 {
      %cst_41 = arith.constant 0.000000e+00 : f32
      %72 = vector.broadcast %cst_41 : f32 to vector<8x128xf32>
      %c0_42 = arith.constant 0 : index
      %c0_43 = arith.constant 0 : index
      %73 = vector.load %arg8[%c0_42, %c0_43] : memref<8x128xf32, #tpu.memory_space<vmem>>, vector<8x128xf32>
      tpu.vector_store %arg8[%c0_42, %c0_43], %72 {strides = array<i32>} : memref<8x128xf32, #tpu.memory_space<vmem>>, vector<8x128xf32>,
    } else {
    }
    %c0 = arith.constant 0 : index
    %c0_1 = arith.constant 0 : index
    %3 = vector.load %arg1[%c0, %c0_1] : memref<64x128xf32, #tpu.memory_space<vmem>>, vector<64x128xf32>
    %c0_2 = arith.constant 0 : index
    %c0_3 = arith.constant 0 : index
    %4 = vector.load %arg2[%c0_2, %c0_3] : memref<128x128xf32, #tpu.memory_space<vmem>>, vector<128x128xf32>
    %cst = arith.constant dense<0.000000e+00> : vector<64x128xf32>
    %5 = tpu.matmul %3, %4, %cst {dimension_numbers = #tpu.dot_dimension_numbers<[1], [0], [0], [1], [0, 0, 1, 1], [], []>} : vector<64x128xf32>, vector<128x128xf32>, vector<64x128xf32> -> vector<64x128xf32>
    %c0_4 = arith.constant 0 : index
    %c0_5 = arith.constant 0 : index
    %6 = vector.load %arg4[%c0_4, %c0_5] : memref<1x128xf32, #tpu.memory_space<vmem>>, vector<1x128xf32>
    %7 = vector.broadcast %6 : vector<1x128xf32> to vector<64x128xf32>
    %8 = arith.addf %5, %7 : vector<64x128xf32>
    %c0_6 = arith.constant 0 : index
    %c0_7 = arith.constant 0 : index
    %9 = vector.load %arg9[%c0_6, %c0_7] : memref<64x128xf32, #tpu.memory_space<vmem>>, vector<64x128xf32>
    tpu.vector_store %arg9[%c0_6, %c0_7], %8 {strides = array<i32>} : memref<64x128xf32, #tpu.memory_space<vmem>>, vector<64x128xf32>,
    %c0_8 = arith.constant 0 : index
    %c0_9 = arith.constant 0 : index
    %10 = vector.load %arg3[%c0_8, %c0_9] : memref<128x128xf32, #tpu.memory_space<vmem>>, vector<128x128xf32>
    %c0_10 = arith.constant 0 : index
    %c0_11 = arith.constant 0 : index
    %11 = vector.load %arg8[%c0_10, %c0_11] : memref<8x128xf32, #tpu.memory_space<vmem>>, vector<8x128xf32>
    %c0_i32_12 = arith.constant 0 : i32
    %c8_i32 = arith.constant 8 : i32
    %12 = arith.muli %c0_i32_12, %c8_i32 : i32
    %13 = tpu.assume_multiple %12, 8 : i32
    %cst_13 = arith.constant dense<0.000000e+00> : vector<8x128xf32>
    %14 = tpu.matmul %11, %10, %cst_13 {dimension_numbers = #tpu.dot_dimension_numbers<[1], [0], [0], [1], [0, 0, 1, 1], [], []>} : vector<8x128xf32>, vector<128x128xf32>, vector<8x128xf32> -> vector<8x128xf32>
    %15 = arith.index_cast %13 : i32 to index
    %c0_14 = arith.constant 0 : index
    %16 = vector.load %arg9[%15, %c0_14] : memref<64x128xf32, #tpu.memory_space<vmem>>, vector<8x128xf32>
    %17 = arith.addf %14, %16 : vector<8x128xf32>
    %18 = math.tanh %17 : vector<8x128xf32>
    %c1_i32 = arith.constant 1 : i32
    %c8_i32_15 = arith.constant 8 : i32
    %19 = arith.muli %c1_i32, %c8_i32_15 : i32
    %20 = tpu.assume_multiple %19, 8 : i32
    %cst_16 = arith.constant dense<0.000000e+00> : vector<8x128xf32>
    %21 = tpu.matmul %18, %10, %cst_16 {dimension_numbers = #tpu.dot_dimension_numbers<[1], [0], [0], [1], [0, 0, 1, 1], [], []>} : vector<8x128xf32>, vector<128x128xf32>, vector<8x128xf32> -> vector<8x128xf32>
    %22 = arith.index_cast %20 : i32 to index
    %c0_17 = arith.constant 0 : index
    %23 = vector.load %arg9[%22, %c0_17] : memref<64x128xf32, #tpu.memory_space<vmem>>, vector<8x128xf32>
    %24 = arith.addf %21, %23 : vector<8x128xf32>
    %25 = math.tanh %24 : vector<8x128xf32>
    %c2_i32 = arith.constant 2 : i32
    %c8_i32_18 = arith.constant 8 : i32
    %26 = arith.muli %c2_i32, %c8_i32_18 : i32
    %27 = tpu.assume_multiple %26, 8 : i32
    %cst_19 = arith.constant dense<0.000000e+00> : vector<8x128xf32>
    %28 = tpu.matmul %25, %10, %cst_19 {dimension_numbers = #tpu.dot_dimension_numbers<[1], [0], [0], [1], [0, 0, 1, 1], [], []>} : vector<8x128xf32>, vector<128x128xf32>, vector<8x128xf32> -> vector<8x128xf32>
    %29 = arith.index_cast %27 : i32 to index
    %c0_20 = arith.constant 0 : index
    %30 = vector.load %arg9[%29, %c0_20] : memref<64x128xf32, #tpu.memory_space<vmem>>, vector<8x128xf32>
    %31 = arith.addf %28, %30 : vector<8x128xf32>
    %32 = math.tanh %31 : vector<8x128xf32>
    %c3_i32 = arith.constant 3 : i32
    %c8_i32_21 = arith.constant 8 : i32
    %33 = arith.muli %c3_i32, %c8_i32_21 : i32
    %34 = tpu.assume_multiple %33, 8 : i32
    %cst_22 = arith.constant dense<0.000000e+00> : vector<8x128xf32>
    %35 = tpu.matmul %32, %10, %cst_22 {dimension_numbers = #tpu.dot_dimension_numbers<[1], [0], [0], [1], [0, 0, 1, 1], [], []>} : vector<8x128xf32>, vector<128x128xf32>, vector<8x128xf32> -> vector<8x128xf32>
    %36 = arith.index_cast %34 : i32 to index
    %c0_23 = arith.constant 0 : index
    %37 = vector.load %arg9[%36, %c0_23] : memref<64x128xf32, #tpu.memory_space<vmem>>, vector<8x128xf32>
    %38 = arith.addf %35, %37 : vector<8x128xf32>
    %39 = math.tanh %38 : vector<8x128xf32>
    %c4_i32 = arith.constant 4 : i32
    %c8_i32_24 = arith.constant 8 : i32
    %40 = arith.muli %c4_i32, %c8_i32_24 : i32
    %41 = tpu.assume_multiple %40, 8 : i32
    %cst_25 = arith.constant dense<0.000000e+00> : vector<8x128xf32>
    %42 = tpu.matmul %39, %10, %cst_25 {dimension_numbers = #tpu.dot_dimension_numbers<[1], [0], [0], [1], [0, 0, 1, 1], [], []>} : vector<8x128xf32>, vector<128x128xf32>, vector<8x128xf32> -> vector<8x128xf32>
    %43 = arith.index_cast %41 : i32 to index
    %c0_26 = arith.constant 0 : index
    %44 = vector.load %arg9[%43, %c0_26] : memref<64x128xf32, #tpu.memory_space<vmem>>, vector<8x128xf32>
    %45 = arith.addf %42, %44 : vector<8x128xf32>
    %46 = math.tanh %45 : vector<8x128xf32>
    %c5_i32 = arith.constant 5 : i32
    %c8_i32_27 = arith.constant 8 : i32
    %47 = arith.muli %c5_i32, %c8_i32_27 : i32
    %48 = tpu.assume_multiple %47, 8 : i32
    %cst_28 = arith.constant dense<0.000000e+00> : vector<8x128xf32>
    %49 = tpu.matmul %46, %10, %cst_28 {dimension_numbers = #tpu.dot_dimension_numbers<[1], [0], [0], [1], [0, 0, 1, 1], [], []>} : vector<8x128xf32>, vector<128x128xf32>, vector<8x128xf32> -> vector<8x128xf32>
    %50 = arith.index_cast %48 : i32 to index
    %c0_29 = arith.constant 0 : index
    %51 = vector.load %arg9[%50, %c0_29] : memref<64x128xf32, #tpu.memory_space<vmem>>, vector<8x128xf32>
    %52 = arith.addf %49, %51 : vector<8x128xf32>
    %53 = math.tanh %52 : vector<8x128xf32>
    %c6_i32 = arith.constant 6 : i32
    %c8_i32_30 = arith.constant 8 : i32
    %54 = arith.muli %c6_i32, %c8_i32_30 : i32
    %55 = tpu.assume_multiple %54, 8 : i32
    %cst_31 = arith.constant dense<0.000000e+00> : vector<8x128xf32>
    %56 = tpu.matmul %53, %10, %cst_31 {dimension_numbers = #tpu.dot_dimension_numbers<[1], [0], [0], [1], [0, 0, 1, 1], [], []>} : vector<8x128xf32>, vector<128x128xf32>, vector<8x128xf32> -> vector<8x128xf32>
    %57 = arith.index_cast %55 : i32 to index
    %c0_32 = arith.constant 0 : index
    %58 = vector.load %arg9[%57, %c0_32] : memref<64x128xf32, #tpu.memory_space<vmem>>, vector<8x128xf32>
    %59 = arith.addf %56, %58 : vector<8x128xf32>
    %60 = math.tanh %59 : vector<8x128xf32>
    %c7_i32 = arith.constant 7 : i32
    %c8_i32_33 = arith.constant 8 : i32
    %61 = arith.muli %c7_i32, %c8_i32_33 : i32
    %62 = tpu.assume_multiple %61, 8 : i32
    %cst_34 = arith.constant dense<0.000000e+00> : vector<8x128xf32>
    %63 = tpu.matmul %60, %10, %cst_34 {dimension_numbers = #tpu.dot_dimension_numbers<[1], [0], [0], [1], [0, 0, 1, 1], [], []>} : vector<8x128xf32>, vector<128x128xf32>, vector<8x128xf32> -> vector<8x128xf32>
    %64 = arith.index_cast %62 : i32 to index
    %c0_35 = arith.constant 0 : index
    %65 = vector.load %arg9[%64, %c0_35] : memref<64x128xf32, #tpu.memory_space<vmem>>, vector<8x128xf32>
    %66 = arith.addf %63, %65 : vector<8x128xf32>
    %67 = math.tanh %66 : vector<8x128xf32>
    %c8_i32_36 = arith.constant 8 : i32
    %c0_37 = arith.constant 0 : index
    %c0_38 = arith.constant 0 : index
    %68 = vector.load %arg8[%c0_37, %c0_38] : memref<8x128xf32, #tpu.memory_space<vmem>>, vector<8x128xf32>
    tpu.vector_store %arg8[%c0_37, %c0_38], %67 {strides = array<i32>} : memref<8x128xf32, #tpu.memory_space<vmem>>, vector<8x128xf32>,
    %c0_i32_39 = arith.constant 0 : i32
    %69 = arith.cmpi eq, %arg0, %c0_i32_39 : i32
    %70 = arith.extui %69 : i1 to i32
    %c0_i32_40 = arith.constant 0 : i32
    %71 = arith.cmpi ne, %70, %c0_i32_40 : i32
    scf.if %71 {
      %c0_41 = arith.constant 0 : index
      %c0_42 = arith.constant 0 : index
      %72 = vector.load %arg5[%c0_41, %c0_42] : memref<128x128xf32, #tpu.memory_space<vmem>>, vector<128x128xf32>
      %cst_43 = arith.constant dense<0.000000e+00> : vector<8x128xf32>
      %73 = tpu.matmul %67, %72, %cst_43 {dimension_numbers = #tpu.dot_dimension_numbers<[1], [0], [0], [1], [0, 0, 1, 1], [], []>} : vector<8x128xf32>, vector<128x128xf32>, vector<8x128xf32> -> vector<8x128xf32>
      %c0_44 = arith.constant 0 : index
      %c0_45 = arith.constant 0 : index
      %74 = vector.load %arg6[%c0_44, %c0_45] : memref<1x128xf32, #tpu.memory_space<vmem>>, vector<1x128xf32>
      %75 = vector.broadcast %74 : vector<1x128xf32> to vector<8x128xf32>
      %76 = arith.addf %73, %75 : vector<8x128xf32>
      %c0_46 = arith.constant 0 : index
      %c0_47 = arith.constant 0 : index
      %77 = vector.load %arg7[%c0_46, %c0_47] : memref<8x128xf32, #tpu.memory_space<vmem>>, vector<8x128xf32>
      tpu.vector_store %arg7[%c0_46, %c0_47], %76 {strides = array<i32>} : memref<8x128xf32, #tpu.memory_space<vmem>>, vector<8x128xf32>,
    } else {
    }
    return
  }
  func.func @transform_0(%arg0: i32) -> (i32, i32) {
    %c0_i32 = arith.constant 0 : i32
    %c0_i32_0 = arith.constant 0 : i32
    return %arg0, %c0_i32 : i32, i32
  }
  func.func @transform_1(%arg0: i32) -> (i32, i32) {
    %c0_i32 = arith.constant 0 : i32
    %c0_i32_0 = arith.constant 0 : i32
    %c0_i32_1 = arith.constant 0 : i32
    return %c0_i32, %c0_i32_0 : i32, i32
  }
  func.func @transform_2(%arg0: i32) -> (i32, i32) {
    %c0_i32 = arith.constant 0 : i32
    %c0_i32_0 = arith.constant 0 : i32
    %c0_i32_1 = arith.constant 0 : i32
    return %c0_i32, %c0_i32_0 : i32, i32
  }
  func.func @transform_3(%arg0: i32) -> (i32, i32) {
    %c0_i32 = arith.constant 0 : i32
    %c0_i32_0 = arith.constant 0 : i32
    %c0_i32_1 = arith.constant 0 : i32
    return %c0_i32, %c0_i32_0 : i32, i32
  }
  func.func @transform_4(%arg0: i32) -> (i32, i32) {
    %c0_i32 = arith.constant 0 : i32
    %c0_i32_0 = arith.constant 0 : i32
    %c0_i32_1 = arith.constant 0 : i32
    return %c0_i32, %c0_i32_0 : i32, i32
  }
  func.func @transform_5(%arg0: i32) -> (i32, i32) {
    %c0_i32 = arith.constant 0 : i32
    %c0_i32_0 = arith.constant 0 : i32
    %c0_i32_1 = arith.constant 0 : i32
    return %c0_i32, %c0_i32_0 : i32, i32
  }
  func.func @transform_6(%arg0: i32) -> (i32, i32) {
    %c0_i32 = arith.constant 0 : i32
    %c0_i32_0 = arith.constant 0 : i32
    %c0_i32_1 = arith.constant 0 : i32
    return %c0_i32, %c0_i32_0 : i32, i32
  }
}

</mosaic_0001>

<llo_original>
// kernel: rnn_net_forward.3
$region0: #{rnn_net_forward.3}
  #allocation0 [shape = 'u32[]', space=smem, size = 0x4, offset = 0x4, fixed_abs, tag = 'smem constant byte address 0x4 - core index']
  #allocation1 [shape = 'u32[72,128]{1,0:T(1,128)}', space=vmem, size = 0x9000, scoped, tag = 'internal scratch']
  #allocation2 [shape = 'f32[8,128]{1,0:T(8,128)}', space=vmem, size = 0x1000, scoped, tag = 'scratch operand']
  #allocation3 [shape = 'f32[64,128]{1,0:T(8,128)}', space=vmem, size = 0x8000, scoped, tag = 'scratch operand']
  %s0 = inlined_call_operand.vmem [shape: f32[64,128], index: 0, kind: input, shape index: {}]
  %s1 = inlined_call_operand.vmem [shape: f32[128,128], index: 1, kind: input, shape index: {}]
  %s2 = inlined_call_operand.vmem [shape: f32[128,128], index: 2, kind: input, shape index: {}]
  %s3 = inlined_call_operand.vmem [shape: f32[1,128], index: 3, kind: input, shape index: {}]
  %s4 = inlined_call_operand.vmem [shape: f32[128,128], index: 4, kind: input, shape index: {}]
  %s5 = inlined_call_operand.vmem [shape: f32[1,128], index: 5, kind: input, shape index: {}]
  %s6 = inlined_call_operand.vmem [shape: f32[8,128], index: 6, kind: output, shape index: {}]
  %s7 = sld [smem:[#allocation0]]
  $region42: #{rnn_net_forward.3} parent=0
    _
  %s9 = ssub.s32 1, %s7
  %s10 = scalar_select 0, %s9, %s7
  // Predicated region
  $region2: #{rnn_net_forward.3} parent=0 // pred_check
    _
  $region3: #{rnn_net_forward.3} parent=0 // pred_check_branch
    %12 = sbr.rel (0) target = $region5
  $region4: #{rnn_net_forward.3} parent=0 // pred_region
    _
  $region5: #{rnn_net_forward.3} parent=0 // pred_fallthru
    _
  // Predicated region
  $region6: #{rnn_net_forward.3} parent=0 // pred_check
    _
  $region7: #{rnn_net_forward.3} parent=0 // pred_check_branch
    %14 = sbr.rel (0) target = $region9
  $region8: #{rnn_net_forward.3} parent=0 // pred_region
    _
  $region9: #{rnn_net_forward.3} parent=0 // pred_fallthru
    _
  // Predicated region
  $region10: #{rnn_net_forward.3} parent=0 // pred_check
    _
  $region11: #{rnn_net_forward.3} parent=0 // pred_check_branch
    %16 = sbr.rel (0) target = $region13
  $region12: #{rnn_net_forward.3} parent=0 // pred_region
    _
  $region13: #{rnn_net_forward.3} parent=0 // pred_fallthru
    _
  // Predicated region
  $region14: #{rnn_net_forward.3} parent=0 // pred_check
    _
  $region15: #{rnn_net_forward.3} parent=0 // pred_check_branch
    %18 = sbr.rel (0) target = $region17
  $region16: #{rnn_net_forward.3} parent=0 // pred_region
    _
  $region17: #{rnn_net_forward.3} parent=0 // pred_fallthru
    _
  // Predicated region
  $region18: #{rnn_net_forward.3} parent=0 // pred_check
    _
  $region19: #{rnn_net_forward.3} parent=0 // pred_check_branch
    %20 = sbr.rel (0) target = $region21
  $region20: #{rnn_net_forward.3} parent=0 // pred_region
    _
  $region21: #{rnn_net_forward.3} parent=0 // pred_fallthru
    _
  // Predicated region
  $region22: #{rnn_net_forward.3} parent=0 // pred_check
    _
  $region23: #{rnn_net_forward.3} parent=0 // pred_check_branch
    %22 = sbr.rel (0) target = $region25
  $region24: #{rnn_net_forward.3} parent=0 // pred_region
    _
  $region25: #{rnn_net_forward.3} parent=0 // pred_fallthru
    _
  %p23 = scmp.eq.s32.totalorder 0, 0
  // Predicated region
  $region26: #{rnn_net_forward.3} parent=0 // pred_check
    %p24 = pneg %p23
  $region27: #{rnn_net_forward.3} parent=0 // pred_check_branch
    %26 = sbr.rel (%p24) target = $region29
  $region28: #{rnn_net_forward.3} parent=0 // pred_region
    %27 = vst [vmem:[#allocation2] sm:$0xff] 0.0
  $region29: #{rnn_net_forward.3} parent=0 // pred_fallthru
    _
  %v28 = vld [vmem:[%s0] sm:$0xff]
  %v29 = vld [vmem:[%s0 + $0x8] sm:$0xff]
  %v30 = vld [vmem:[%s0 + $0x10] sm:$0xff]
  %v31 = vld [vmem:[%s0 + $0x18] sm:$0xff]
  %v32 = vld [vmem:[%s0 + $0x20] sm:$0xff]
  %v33 = vld [vmem:[%s0 + $0x28] sm:$0xff]
  %v34 = vld [vmem:[%s0 + $0x30] sm:$0xff]
  %v35 = vld [vmem:[%s0 + $0x38] sm:$0xff]
  %v36 = vld [vmem:[%s1] sm:$0xff]
  %v37 = vld [vmem:[%s1 + $0x8] sm:$0xff]
  %v38 = vld [vmem:[%s1 + $0x10] sm:$0xff]
  %v39 = vld [vmem:[%s1 + $0x18] sm:$0xff]
  %v40 = vld [vmem:[%s1 + $0x20] sm:$0xff]
  %v41 = vld [vmem:[%s1 + $0x28] sm:$0xff]
  %v42 = vld [vmem:[%s1 + $0x30] sm:$0xff]
  %v43 = vld [vmem:[%s1 + $0x38] sm:$0xff]
  %v44 = vld [vmem:[%s1 + $0x40] sm:$0xff]
  %v45 = vld [vmem:[%s1 + $0x48] sm:$0xff]
  %v46 = vld [vmem:[%s1 + $0x50] sm:$0xff]
  %v47 = vld [vmem:[%s1 + $0x58] sm:$0xff]
  %v48 = vld [vmem:[%s1 + $0x60] sm:$0xff]
  %v49 = vld [vmem:[%s1 + $0x68] sm:$0xff]
  %v50 = vld [vmem:[%s1 + $0x70] sm:$0xff]
  %v51 = vld [vmem:[%s1 + $0x78] sm:$0xff]
  %v52 = vld [vmem:[%s3] sm:$0x1]
  %v54 = vperm.slane %v52, 0
  %56 = vmatpush.msra.mxu0 %v51
  %57 = vmatpush.msra.mxu0 %v50
  %58 = vmatpush.msra.mxu0 %v49
  %59 = vmatpush.msra.mxu0 %v48
  %60 = vmatpush.msra.mxu0 %v47
  %61 = vmatpush.msra.mxu0 %v46
  %62 = vmatpush.msra.mxu0 %v45
  %63 = vmatpush.msra.mxu0 %v44
  %64 = vmatpush.msra.mxu0 %v43
  %65 = vmatpush.msra.mxu0 %v42
  %66 = vmatpush.msra.mxu0 %v41
  %67 = vmatpush.msra.mxu0 %v40
  %68 = vmatpush.msra.mxu0 %v39
  %69 = vmatpush.msra.mxu0 %v38
  %70 = vmatpush.msra.mxu0 %v37
  %71 = vmatpush.msra.mxu0 %v36
  %72 = vmatmul.f32.gmra.mxu0 %v28
  %v73 = vpop.f32.mrf.mxu0
  %v74 = vadd.f32 %v54, %v73
  %75 = vmatmul.f32.gmra.mxu0 %v29
  %v76 = vpop.f32.mrf.mxu0
  %v77 = vadd.f32 %v54, %v76
  %78 = vmatmul.f32.gmra.mxu0 %v30
  %v79 = vpop.f32.mrf.mxu0
  %v80 = vadd.f32 %v54, %v79
  %81 = vmatmul.f32.gmra.mxu0 %v31
  %v82 = vpop.f32.mrf.mxu0
  %v83 = vadd.f32 %v54, %v82
  %84 = vmatmul.f32.gmra.mxu0 %v32
  %v85 = vpop.f32.mrf.mxu0
  %v86 = vadd.f32 %v54, %v85
  %87 = vmatmul.f32.gmra.mxu0 %v33
  %v88 = vpop.f32.mrf.mxu0
  %v89 = vadd.f32 %v54, %v88
  %90 = vmatmul.f32.gmra.mxu0 %v34
  %v91 = vpop.f32.mrf.mxu0
  %v92 = vadd.f32 %v54, %v91
  %93 = vmatmul.f32.gmra.mxu0 %v35
  %v94 = vpop.f32.mrf.mxu0
  %v95 = vadd.f32 %v54, %v94
  %96 = vdwg.mxu0
  %97 = vst [vmem:[#allocation3] sm:$0xff] %v74
  %98 = vst [vmem:[#allocation3 + $0x8] sm:$0xff] %v77
  %99 = vst [vmem:[#allocation3 + $0x10] sm:$0xff] %v80
  %100 = vst [vmem:[#allocation3 + $0x18] sm:$0xff] %v83
  %101 = vst [vmem:[#allocation3 + $0x20] sm:$0xff] %v86
  %102 = vst [vmem:[#allocation3 + $0x28] sm:$0xff] %v89
  %103 = vst [vmem:[#allocation3 + $0x30] sm:$0xff] %v92
  %104 = vst [vmem:[#allocation3 + $0x38] sm:$0xff] %v95
  %v105 = vld [vmem:[%s2] sm:$0xff]
  %v106 = vld [vmem:[%s2 + $0x8] sm:$0xff]
  %v107 = vld [vmem:[%s2 + $0x10] sm:$0xff]
  %v108 = vld [vmem:[%s2 + $0x18] sm:$0xff]
  %v109 = vld [vmem:[%s2 + $0x20] sm:$0xff]
  %v110 = vld [vmem:[%s2 + $0x28] sm:$0xff]
  %v111 = vld [vmem:[%s2 + $0x30] sm:$0xff]
  %v112 = vld [vmem:[%s2 + $0x38] sm:$0xff]
  %v113 = vld [vmem:[%s2 + $0x40] sm:$0xff]
  %v114 = vld [vmem:[%s2 + $0x48] sm:$0xff]
  %v115 = vld [vmem:[%s2 + $0x50] sm:$0xff]
  %v116 = vld [vmem:[%s2 + $0x58] sm:$0xff]
  %v117 = vld [vmem:[%s2 + $0x60] sm:$0xff]
  %v118 = vld [vmem:[%s2 + $0x68] sm:$0xff]
  %v119 = vld [vmem:[%s2 + $0x70] sm:$0xff]
  %v120 = vld [vmem:[%s2 + $0x78] sm:$0xff]
  %v121 = vld [vmem:[#allocation2] sm:$0xff]
  %v122 = vld [vmem:[#allocation3] sm:$0xff]
  %123 = vmatpush.msra.mxu0 %v120
  %124 = vmatpush.msra.mxu0 %v119
  %125 = vmatpush.msra.mxu0 %v118
  %126 = vmatpush.msra.mxu0 %v117
  %127 = vmatpush.msra.mxu0 %v116
  %128 = vmatpush.msra.mxu0 %v115
  %129 = vmatpush.msra.mxu0 %v114
  %130 = vmatpush.msra.mxu0 %v113
  %131 = vmatpush.msra.mxu0 %v112
  %132 = vmatpush.msra.mxu0 %v111
  %133 = vmatpush.msra.mxu0 %v110
  %134 = vmatpush.msra.mxu0 %v109
  %135 = vmatpush.msra.mxu0 %v108
  %136 = vmatpush.msra.mxu0 %v107
  %137 = vmatpush.msra.mxu0 %v106
  %138 = vmatpush.msra.mxu0 %v105
  %139 = vmatmul.f32.gmra.mxu0 %v121
  %v140 = vpop.f32.mrf.mxu0
  %v141 = vadd.f32 %v122, %v140
  %142 = vdwg.mxu0
  %v143 = vtanh.pop %v141
  %s144 = scalar_lea.vmem [#allocation3], 8
  %v145 = vld [vmem:[%s144] sm:$0xff]
  %146 = vmatpush.msra.mxu0 %v120
  %147 = vmatpush.msra.mxu0 %v119
  %148 = vmatpush.msra.mxu0 %v118
  %149 = vmatpush.msra.mxu0 %v117
  %150 = vmatpush.msra.mxu0 %v116
  %151 = vmatpush.msra.mxu0 %v115
  %152 = vmatpush.msra.mxu0 %v114
  %153 = vmatpush.msra.mxu0 %v113
  %154 = vmatpush.msra.mxu0 %v112
  %155 = vmatpush.msra.mxu0 %v111
  %156 = vmatpush.msra.mxu0 %v110
  %157 = vmatpush.msra.mxu0 %v109
  %158 = vmatpush.msra.mxu0 %v108
  %159 = vmatpush.msra.mxu0 %v107
  %160 = vmatpush.msra.mxu0 %v106
  %161 = vmatpush.msra.mxu0 %v105
  %162 = vmatmul.f32.gmra.mxu0 %v143
  %v163 = vpop.f32.mrf.mxu0
  %v164 = vadd.f32 %v145, %v163
  %165 = vdwg.mxu0
  %v166 = vtanh.pop %v164
  %s167 = scalar_lea.vmem [#allocation3], 16
  %v168 = vld [vmem:[%s167] sm:$0xff]
  %169 = vmatpush.msra.mxu0 %v120
  %170 = vmatpush.msra.mxu0 %v119
  %171 = vmatpush.msra.mxu0 %v118
  %172 = vmatpush.msra.mxu0 %v117
  %173 = vmatpush.msra.mxu0 %v116
  %174 = vmatpush.msra.mxu0 %v115
  %175 = vmatpush.msra.mxu0 %v114
  %176 = vmatpush.msra.mxu0 %v113
  %177 = vmatpush.msra.mxu0 %v112
  %178 = vmatpush.msra.mxu0 %v111
  %179 = vmatpush.msra.mxu0 %v110
  %180 = vmatpush.msra.mxu0 %v109
  %181 = vmatpush.msra.mxu0 %v108
  %182 = vmatpush.msra.mxu0 %v107
  %183 = vmatpush.msra.mxu0 %v106
  %184 = vmatpush.msra.mxu0 %v105
  %185 = vmatmul.f32.gmra.mxu0 %v166
  %v186 = vpop.f32.mrf.mxu0
  %v187 = vadd.f32 %v168, %v186
  %188 = vdwg.mxu0
  %v189 = vtanh.pop %v187
  %s190 = scalar_lea.vmem [#allocation3], 24
  %v191 = vld [vmem:[%s190] sm:$0xff]
  %192 = vmatpush.msra.mxu0 %v120
  %193 = vmatpush.msra.mxu0 %v119
  %194 = vmatpush.msra.mxu0 %v118
  %195 = vmatpush.msra.mxu0 %v117
  %196 = vmatpush.msra.mxu0 %v116
  %197 = vmatpush.msra.mxu0 %v115
  %198 = vmatpush.msra.mxu0 %v114
  %199 = vmatpush.msra.mxu0 %v113
  %200 = vmatpush.msra.mxu0 %v112
  %201 = vmatpush.msra.mxu0 %v111
  %202 = vmatpush.msra.mxu0 %v110
  %203 = vmatpush.msra.mxu0 %v109
  %204 = vmatpush.msra.mxu0 %v108
  %205 = vmatpush.msra.mxu0 %v107
  %206 = vmatpush.msra.mxu0 %v106
  %207 = vmatpush.msra.mxu0 %v105
  %208 = vmatmul.f32.gmra.mxu0 %v189
  %v209 = vpop.f32.mrf.mxu0
  %v210 = vadd.f32 %v191, %v209
  %211 = vdwg.mxu0
  %v212 = vtanh.pop %v210
  %s213 = scalar_lea.vmem [#allocation3], 32
  %v214 = vld [vmem:[%s213] sm:$0xff]
  %215 = vmatpush.msra.mxu0 %v120
  %216 = vmatpush.msra.mxu0 %v119
  %217 = vmatpush.msra.mxu0 %v118
  %218 = vmatpush.msra.mxu0 %v117
  %219 = vmatpush.msra.mxu0 %v116
  %220 = vmatpush.msra.mxu0 %v115
  %221 = vmatpush.msra.mxu0 %v114
  %222 = vmatpush.msra.mxu0 %v113
  %223 = vmatpush.msra.mxu0 %v112
  %224 = vmatpush.msra.mxu0 %v111
  %225 = vmatpush.msra.mxu0 %v110
  %226 = vmatpush.msra.mxu0 %v109
  %227 = vmatpush.msra.mxu0 %v108
  %228 = vmatpush.msra.mxu0 %v107
  %229 = vmatpush.msra.mxu0 %v106
  %230 = vmatpush.msra.mxu0 %v105
  %231 = vmatmul.f32.gmra.mxu0 %v212
  %v232 = vpop.f32.mrf.mxu0
  %v233 = vadd.f32 %v214, %v232
  %234 = vdwg.mxu0
  %v235 = vtanh.pop %v233
  %s236 = scalar_lea.vmem [#allocation3], 40
  %v237 = vld [vmem:[%s236] sm:$0xff]
  %238 = vmatpush.msra.mxu0 %v120
  %239 = vmatpush.msra.mxu0 %v119
  %240 = vmatpush.msra.mxu0 %v118
  %241 = vmatpush.msra.mxu0 %v117
  %242 = vmatpush.msra.mxu0 %v116
  %243 = vmatpush.msra.mxu0 %v115
  %244 = vmatpush.msra.mxu0 %v114
  %245 = vmatpush.msra.mxu0 %v113
  %246 = vmatpush.msra.mxu0 %v112
  %247 = vmatpush.msra.mxu0 %v111
  %248 = vmatpush.msra.mxu0 %v110
  %249 = vmatpush.msra.mxu0 %v109
  %250 = vmatpush.msra.mxu0 %v108
  %251 = vmatpush.msra.mxu0 %v107
  %252 = vmatpush.msra.mxu0 %v106
  %253 = vmatpush.msra.mxu0 %v105
  %254 = vmatmul.f32.gmra.mxu0 %v235
  %v255 = vpop.f32.mrf.mxu0
  %v256 = vadd.f32 %v237, %v255
  %257 = vdwg.mxu0
  %v258 = vtanh.pop %v256
  %s259 = scalar_lea.vmem [#allocation3], 48
  %v260 = vld [vmem:[%s259] sm:$0xff]
  %261 = vmatpush.msra.mxu0 %v120
  %262 = vmatpush.msra.mxu0 %v119
  %263 = vmatpush.msra.mxu0 %v118
  %264 = vmatpush.msra.mxu0 %v117
  %265 = vmatpush.msra.mxu0 %v116
  %266 = vmatpush.msra.mxu0 %v115
  %267 = vmatpush.msra.mxu0 %v114
  %268 = vmatpush.msra.mxu0 %v113
  %269 = vmatpush.msra.mxu0 %v112
  %270 = vmatpush.msra.mxu0 %v111
  %271 = vmatpush.msra.mxu0 %v110
  %272 = vmatpush.msra.mxu0 %v109
  %273 = vmatpush.msra.mxu0 %v108
  %274 = vmatpush.msra.mxu0 %v107
  %275 = vmatpush.msra.mxu0 %v106
  %276 = vmatpush.msra.mxu0 %v105
  %277 = vmatmul.f32.gmra.mxu0 %v258
  %v278 = vpop.f32.mrf.mxu0
  %v279 = vadd.f32 %v260, %v278
  %280 = vdwg.mxu0
  %v281 = vtanh.pop %v279
  %s282 = scalar_lea.vmem [#allocation3], 56
  %v283 = vld [vmem:[%s282] sm:$0xff]
  %284 = vmatpush.msra.mxu0 %v120
  %285 = vmatpush.msra.mxu0 %v119
  %286 = vmatpush.msra.mxu0 %v118
  %287 = vmatpush.msra.mxu0 %v117
  %288 = vmatpush.msra.mxu0 %v116
  %289 = vmatpush.msra.mxu0 %v115
  %290 = vmatpush.msra.mxu0 %v114
  %291 = vmatpush.msra.mxu0 %v113
  %292 = vmatpush.msra.mxu0 %v112
  %293 = vmatpush.msra.mxu0 %v111
  %294 = vmatpush.msra.mxu0 %v110
  %295 = vmatpush.msra.mxu0 %v109
  %296 = vmatpush.msra.mxu0 %v108
  %297 = vmatpush.msra.mxu0 %v107
  %298 = vmatpush.msra.mxu0 %v106
  %299 = vmatpush.msra.mxu0 %v105
  %300 = vmatmul.f32.gmra.mxu0 %v281
  %v301 = vpop.f32.mrf.mxu0
  %v302 = vadd.f32 %v283, %v301
  %303 = vdwg.mxu0
  %v304 = vtanh.pop %v302
  %305 = vst [vmem:[#allocation2] sm:$0xff] %v304
  // Predicated region
  $region30: #{rnn_net_forward.3} parent=0 // pred_check
    %p306 = pneg %p23
  $region31: #{rnn_net_forward.3} parent=0 // pred_check_branch
    %308 = sbr.rel (%p306) target = $region33
  $region32: #{rnn_net_forward.3} parent=0 // pred_region
    %v309 = vld [vmem:[%s4] sm:$0xff]
    %v310 = vld [vmem:[%s4 + $0x8] sm:$0xff]
    %v311 = vld [vmem:[%s4 + $0x10] sm:$0xff]
    %v312 = vld [vmem:[%s4 + $0x18] sm:$0xff]
    %v313 = vld [vmem:[%s4 + $0x20] sm:$0xff]
    %v314 = vld [vmem:[%s4 + $0x28] sm:$0xff]
    %v315 = vld [vmem:[%s4 + $0x30] sm:$0xff]
    %v316 = vld [vmem:[%s4 + $0x38] sm:$0xff]
    %v317 = vld [vmem:[%s4 + $0x40] sm:$0xff]
    %v318 = vld [vmem:[%s4 + $0x48] sm:$0xff]
    %v319 = vld [vmem:[%s4 + $0x50] sm:$0xff]
    %v320 = vld [vmem:[%s4 + $0x58] sm:$0xff]
    %v321 = vld [vmem:[%s4 + $0x60] sm:$0xff]
    %v322 = vld [vmem:[%s4 + $0x68] sm:$0xff]
    %v323 = vld [vmem:[%s4 + $0x70] sm:$0xff]
    %v324 = vld [vmem:[%s4 + $0x78] sm:$0xff]
    %v325 = vld [vmem:[%s5] sm:$0x1]
    %v327 = vperm.slane %v325, 0
    %329 = vmatpush.msra.mxu0 %v324
    %330 = vmatpush.msra.mxu0 %v323
    %331 = vmatpush.msra.mxu0 %v322
    %332 = vmatpush.msra.mxu0 %v321
    %333 = vmatpush.msra.mxu0 %v320
    %334 = vmatpush.msra.mxu0 %v319
    %335 = vmatpush.msra.mxu0 %v318
    %336 = vmatpush.msra.mxu0 %v317
    %337 = vmatpush.msra.mxu0 %v316
    %338 = vmatpush.msra.mxu0 %v315
    %339 = vmatpush.msra.mxu0 %v314
    %340 = vmatpush.msra.mxu0 %v313
    %341 = vmatpush.msra.mxu0 %v312
    %342 = vmatpush.msra.mxu0 %v311
    %343 = vmatpush.msra.mxu0 %v310
    %344 = vmatpush.msra.mxu0 %v309
    %345 = vmatmul.f32.gmra.mxu0 %v304
    %v346 = vpop.f32.mrf.mxu0
    %v347 = vadd.f32 %v327, %v346
    %348 = vdwg.mxu0
    %349 = vst [vmem:[%s6] sm:$0xff] %v347
  $region33: #{rnn_net_forward.3} parent=0 // pred_fallthru
    _
  // Predicated region
  $region34: #{rnn_net_forward.3} parent=0 // pred_check
    _
  $region35: #{rnn_net_forward.3} parent=0 // pred_check_branch
    %351 = sbr.rel (0) target = $region37
  $region36: #{rnn_net_forward.3} parent=0 // pred_region
    _
  $region37: #{rnn_net_forward.3} parent=0 // pred_fallthru
    _
  // Predicated region
  $region38: #{rnn_net_forward.3} parent=0 // pred_check
    _
  $region39: #{rnn_net_forward.3} parent=0 // pred_check_branch
    %353 = sbr.rel (0) target = $region41
  $region40: #{rnn_net_forward.3} parent=0 // pred_region
    _
  $region41: #{rnn_net_forward.3} parent=0 // pred_fallthru
    _

// kernel: rnn_net_forward.2
$region0: #{rnn_net_forward.2}
  #allocation0 [shape = 'u32[]', space=smem, size = 0x4, offset = 0x4, fixed_abs, tag = 'smem constant byte address 0x4 - core index']
  #allocation1 [shape = 'u32[72,128]{1,0:T(1,128)}', space=vmem, size = 0x9000, scoped, tag = 'internal scratch']
  #allocation2 [shape = 'f32[8,128]{1,0:T(8,128)}', space=vmem, size = 0x1000, scoped, tag = 'scratch operand']
  #allocation3 [shape = 'f32[64,128]{1,0:T(8,128)}', space=vmem, size = 0x8000, scoped, tag = 'scratch operand']
  %s0 = inlined_call_operand.vmem [shape: f32[64,4], index: 0, kind: input, shape index: {}]
  %s1 = inlined_call_operand.vmem [shape: f32[4,128], index: 1, kind: input, shape index: {}]
  %s2 = inlined_call_operand.vmem [shape: f32[128,128], index: 2, kind: input, shape index: {}]
  %s3 = inlined_call_operand.vmem [shape: f32[1,128], index: 3, kind: input, shape index: {}]
  %s4 = inlined_call_operand.vmem [shape: f32[64,128], index: 4, kind: output, shape index: {}]
  %s5 = sld [smem:[#allocation0]]
  $region30: #{rnn_net_forward.2} parent=0
    _
  %s7 = ssub.s32 1, %s5
  %s8 = scalar_select 0, %s7, %s5
  // Predicated region
  $region2: #{rnn_net_forward.2} parent=0 // pred_check
    _
  $region3: #{rnn_net_forward.2} parent=0 // pred_check_branch
    %10 = sbr.rel (0) target = $region5
  $region4: #{rnn_net_forward.2} parent=0 // pred_region
    _
  $region5: #{rnn_net_forward.2} parent=0 // pred_fallthru
    _
  // Predicated region
  $region6: #{rnn_net_forward.2} parent=0 // pred_check
    _
  $region7: #{rnn_net_forward.2} parent=0 // pred_check_branch
    %12 = sbr.rel (0) target = $region9
  $region8: #{rnn_net_forward.2} parent=0 // pred_region
    _
  $region9: #{rnn_net_forward.2} parent=0 // pred_fallthru
    _
  // Predicated region
  $region10: #{rnn_net_forward.2} parent=0 // pred_check
    _
  $region11: #{rnn_net_forward.2} parent=0 // pred_check_branch
    %14 = sbr.rel (0) target = $region13
  $region12: #{rnn_net_forward.2} parent=0 // pred_region
    _
  $region13: #{rnn_net_forward.2} parent=0 // pred_fallthru
    _
  // Predicated region
  $region14: #{rnn_net_forward.2} parent=0 // pred_check
    _
  $region15: #{rnn_net_forward.2} parent=0 // pred_check_branch
    %16 = sbr.rel (0) target = $region17
  $region16: #{rnn_net_forward.2} parent=0 // pred_region
    _
  $region17: #{rnn_net_forward.2} parent=0 // pred_fallthru
    _
  %p17 = scmp.eq.s32.totalorder 0, 0
  // Predicated region
  $region18: #{rnn_net_forward.2} parent=0 // pred_check
    %p18 = pneg %p17
  $region19: #{rnn_net_forward.2} parent=0 // pred_check_branch
    %20 = sbr.rel (%p18) target = $region21
  $region20: #{rnn_net_forward.2} parent=0 // pred_region
    %21 = vst [vmem:[#allocation2] sm:$0xff] 0.0
  $region21: #{rnn_net_forward.2} parent=0 // pred_fallthru
    _
  %v22 = vld [vmem:[%s0] sm:$0xff]
  %v23 = vld [vmem:[%s0 + $0x8] sm:$0xff]
  %v24 = vld [vmem:[%s0 + $0x10] sm:$0xff]
  %v25 = vld [vmem:[%s0 + $0x18] sm:$0xff]
  %v26 = vld [vmem:[%s0 + $0x20] sm:$0xff]
  %v27 = vld [vmem:[%s0 + $0x28] sm:$0xff]
  %v28 = vld [vmem:[%s0 + $0x30] sm:$0xff]
  %v29 = vld [vmem:[%s0 + $0x38] sm:$0xff]
  %v30 = vld [vmem:[%s1] sm:$0xf]
  %v31 = vld [vmem:[%s3] sm:$0x1]
  %v33 = vperm.slane %v31, 0
  %vm35 = vcmask 31744
  %v37 = vsel %vm35, %v22, 0
  %v40 = vsel %vm35, %v23, 0
  %v43 = vsel %vm35, %v24, 0
  %v46 = vsel %vm35, %v25, 0
  %v49 = vsel %vm35, %v26, 0
  %v52 = vsel %vm35, %v27, 0
  %v55 = vsel %vm35, %v28, 0
  %v58 = vsel %vm35, %v29, 0
  %vm60 = vcmask 1043456
  %v62 = vsel %vm60, %v30, 0
  %64 = vmatpush.msra.mxu0 0.0
  %65 = vmatpush.msra.mxu0 0.0
  %66 = vmatpush.msra.mxu0 0.0
  %67 = vmatpush.msra.mxu0 0.0
  %68 = vmatpush.msra.mxu0 0.0
  %69 = vmatpush.msra.mxu0 0.0
  %70 = vmatpush.msra.mxu0 0.0
  %71 = vmatpush.msra.mxu0 0.0
  %72 = vmatpush.msra.mxu0 0.0
  %73 = vmatpush.msra.mxu0 0.0
  %74 = vmatpush.msra.mxu0 0.0
  %75 = vmatpush.msra.mxu0 0.0
  %76 = vmatpush.msra.mxu0 0.0
  %77 = vmatpush.msra.mxu0 0.0
  %78 = vmatpush.msra.mxu0 0.0
  %79 = vmatpush.msra.mxu0 %v62
  %80 = vmatmul.f32.gmra.mxu0 %v37
  %v81 = vpop.f32.mrf.mxu0
  %v82 = vadd.f32 %v33, %v81
  %83 = vmatmul.f32.gmra.mxu0 %v40
  %v84 = vpop.f32.mrf.mxu0
  %v85 = vadd.f32 %v33, %v84
  %86 = vmatmul.f32.gmra.mxu0 %v43
  %v87 = vpop.f32.mrf.mxu0
  %v88 = vadd.f32 %v33, %v87
  %89 = vmatmul.f32.gmra.mxu0 %v46
  %v90 = vpop.f32.mrf.mxu0
  %v91 = vadd.f32 %v33, %v90
  %92 = vmatmul.f32.gmra.mxu0 %v49
  %v93 = vpop.f32.mrf.mxu0
  %v94 = vadd.f32 %v33, %v93
  %95 = vmatmul.f32.gmra.mxu0 %v52
  %v96 = vpop.f32.mrf.mxu0
  %v97 = vadd.f32 %v33, %v96
  %98 = vmatmul.f32.gmra.mxu0 %v55
  %v99 = vpop.f32.mrf.mxu0
  %v100 = vadd.f32 %v33, %v99
  %101 = vmatmul.f32.gmra.mxu0 %v58
  %v102 = vpop.f32.mrf.mxu0
  %v103 = vadd.f32 %v33, %v102
  %104 = vdwg.mxu0
  %105 = vst [vmem:[#allocation3] sm:$0xff] %v82
  %106 = vst [vmem:[#allocation3 + $0x8] sm:$0xff] %v85
  %107 = vst [vmem:[#allocation3 + $0x10] sm:$0xff] %v88
  %108 = vst [vmem:[#allocation3 + $0x18] sm:$0xff] %v91
  %109 = vst [vmem:[#allocation3 + $0x20] sm:$0xff] %v94
  %110 = vst [vmem:[#allocation3 + $0x28] sm:$0xff] %v97
  %111 = vst [vmem:[#allocation3 + $0x30] sm:$0xff] %v100
  %112 = vst [vmem:[#allocation3 + $0x38] sm:$0xff] %v103
  %v113 = vld [vmem:[%s2] sm:$0xff]
  %v114 = vld [vmem:[%s2 + $0x8] sm:$0xff]
  %v115 = vld [vmem:[%s2 + $0x10] sm:$0xff]
  %v116 = vld [vmem:[%s2 + $0x18] sm:$0xff]
  %v117 = vld [vmem:[%s2 + $0x20] sm:$0xff]
  %v118 = vld [vmem:[%s2 + $0x28] sm:$0xff]
  %v119 = vld [vmem:[%s2 + $0x30] sm:$0xff]
  %v120 = vld [vmem:[%s2 + $0x38] sm:$0xff]
  %v121 = vld [vmem:[%s2 + $0x40] sm:$0xff]
  %v122 = vld [vmem:[%s2 + $0x48] sm:$0xff]
  %v123 = vld [vmem:[%s2 + $0x50] sm:$0xff]
  %v124 = vld [vmem:[%s2 + $0x58] sm:$0xff]
  %v125 = vld [vmem:[%s2 + $0x60] sm:$0xff]
  %v126 = vld [vmem:[%s2 + $0x68] sm:$0xff]
  %v127 = vld [vmem:[%s2 + $0x70] sm:$0xff]
  %v128 = vld [vmem:[%s2 + $0x78] sm:$0xff]
  %v129 = vld [vmem:[#allocation2] sm:$0xff]
  %v130 = vld [vmem:[#allocation3] sm:$0xff]
  %131 = vmatpush.msra.mxu0 %v128
  %132 = vmatpush.msra.mxu0 %v127
  %133 = vmatpush.msra.mxu0 %v126
  %134 = vmatpush.msra.mxu0 %v125
  %135 = vmatpush.msra.mxu0 %v124
  %136 = vmatpush.msra.mxu0 %v123
  %137 = vmatpush.msra.mxu0 %v122
  %138 = vmatpush.msra.mxu0 %v121
  %139 = vmatpush.msra.mxu0 %v120
  %140 = vmatpush.msra.mxu0 %v119
  %141 = vmatpush.msra.mxu0 %v118
  %142 = vmatpush.msra.mxu0 %v117
  %143 = vmatpush.msra.mxu0 %v116
  %144 = vmatpush.msra.mxu0 %v115
  %145 = vmatpush.msra.mxu0 %v114
  %146 = vmatpush.msra.mxu0 %v113
  %147 = vmatmul.f32.gmra.mxu0 %v129
  %v148 = vpop.f32.mrf.mxu0
  %v149 = vadd.f32 %v130, %v148
  %150 = vdwg.mxu0
  %v151 = vtanh.pop %v149
  %152 = vst [vmem:[%s4] sm:$0xff] %v151
  %s153 = scalar_lea.vmem [#allocation3], 8
  %v154 = vld [vmem:[%s153] sm:$0xff]
  %155 = vmatpush.msra.mxu0 %v128
  %156 = vmatpush.msra.mxu0 %v127
  %157 = vmatpush.msra.mxu0 %v126
  %158 = vmatpush.msra.mxu0 %v125
  %159 = vmatpush.msra.mxu0 %v124
  %160 = vmatpush.msra.mxu0 %v123
  %161 = vmatpush.msra.mxu0 %v122
  %162 = vmatpush.msra.mxu0 %v121
  %163 = vmatpush.msra.mxu0 %v120
  %164 = vmatpush.msra.mxu0 %v119
  %165 = vmatpush.msra.mxu0 %v118
  %166 = vmatpush.msra.mxu0 %v117
  %167 = vmatpush.msra.mxu0 %v116
  %168 = vmatpush.msra.mxu0 %v115
  %169 = vmatpush.msra.mxu0 %v114
  %170 = vmatpush.msra.mxu0 %v113
  %171 = vmatmul.f32.gmra.mxu0 %v151
  %v172 = vpop.f32.mrf.mxu0
  %v173 = vadd.f32 %v154, %v172
  %174 = vdwg.mxu0
  %v175 = vtanh.pop %v173
  %s176 = scalar_lea.vmem %s4, 8
  %177 = vst [vmem:[%s176] sm:$0xff] %v175
  %s178 = scalar_lea.vmem [#allocation3], 16
  %v179 = vld [vmem:[%s178] sm:$0xff]
  %180 = vmatpush.msra.mxu0 %v128
  %181 = vmatpush.msra.mxu0 %v127
  %182 = vmatpush.msra.mxu0 %v126
  %183 = vmatpush.msra.mxu0 %v125
  %184 = vmatpush.msra.mxu0 %v124
  %185 = vmatpush.msra.mxu0 %v123
  %186 = vmatpush.msra.mxu0 %v122
  %187 = vmatpush.msra.mxu0 %v121
  %188 = vmatpush.msra.mxu0 %v120
  %189 = vmatpush.msra.mxu0 %v119
  %190 = vmatpush.msra.mxu0 %v118
  %191 = vmatpush.msra.mxu0 %v117
  %192 = vmatpush.msra.mxu0 %v116
  %193 = vmatpush.msra.mxu0 %v115
  %194 = vmatpush.msra.mxu0 %v114
  %195 = vmatpush.msra.mxu0 %v113
  %196 = vmatmul.f32.gmra.mxu0 %v175
  %v197 = vpop.f32.mrf.mxu0
  %v198 = vadd.f32 %v179, %v197
  %199 = vdwg.mxu0
  %v200 = vtanh.pop %v198
  %s201 = scalar_lea.vmem %s4, 16
  %202 = vst [vmem:[%s201] sm:$0xff] %v200
  %s203 = scalar_lea.vmem [#allocation3], 24
  %v204 = vld [vmem:[%s203] sm:$0xff]
  %205 = vmatpush.msra.mxu0 %v128
  %206 = vmatpush.msra.mxu0 %v127
  %207 = vmatpush.msra.mxu0 %v126
  %208 = vmatpush.msra.mxu0 %v125
  %209 = vmatpush.msra.mxu0 %v124
  %210 = vmatpush.msra.mxu0 %v123
  %211 = vmatpush.msra.mxu0 %v122
  %212 = vmatpush.msra.mxu0 %v121
  %213 = vmatpush.msra.mxu0 %v120
  %214 = vmatpush.msra.mxu0 %v119
  %215 = vmatpush.msra.mxu0 %v118
  %216 = vmatpush.msra.mxu0 %v117
  %217 = vmatpush.msra.mxu0 %v116
  %218 = vmatpush.msra.mxu0 %v115
  %219 = vmatpush.msra.mxu0 %v114
  %220 = vmatpush.msra.mxu0 %v113
  %221 = vmatmul.f32.gmra.mxu0 %v200
  %v222 = vpop.f32.mrf.mxu0
  %v223 = vadd.f32 %v204, %v222
  %224 = vdwg.mxu0
  %v225 = vtanh.pop %v223
  %s226 = scalar_lea.vmem %s4, 24
  %227 = vst [vmem:[%s226] sm:$0xff] %v225
  %s228 = scalar_lea.vmem [#allocation3], 32
  %v229 = vld [vmem:[%s228] sm:$0xff]
  %230 = vmatpush.msra.mxu0 %v128
  %231 = vmatpush.msra.mxu0 %v127
  %232 = vmatpush.msra.mxu0 %v126
  %233 = vmatpush.msra.mxu0 %v125
  %234 = vmatpush.msra.mxu0 %v124
  %235 = vmatpush.msra.mxu0 %v123
  %236 = vmatpush.msra.mxu0 %v122
  %237 = vmatpush.msra.mxu0 %v121
  %238 = vmatpush.msra.mxu0 %v120
  %239 = vmatpush.msra.mxu0 %v119
  %240 = vmatpush.msra.mxu0 %v118
  %241 = vmatpush.msra.mxu0 %v117
  %242 = vmatpush.msra.mxu0 %v116
  %243 = vmatpush.msra.mxu0 %v115
  %244 = vmatpush.msra.mxu0 %v114
  %245 = vmatpush.msra.mxu0 %v113
  %246 = vmatmul.f32.gmra.mxu0 %v225
  %v247 = vpop.f32.mrf.mxu0
  %v248 = vadd.f32 %v229, %v247
  %249 = vdwg.mxu0
  %v250 = vtanh.pop %v248
  %s251 = scalar_lea.vmem %s4, 32
  %252 = vst [vmem:[%s251] sm:$0xff] %v250
  %s253 = scalar_lea.vmem [#allocation3], 40
  %v254 = vld [vmem:[%s253] sm:$0xff]
  %255 = vmatpush.msra.mxu0 %v128
  %256 = vmatpush.msra.mxu0 %v127
  %257 = vmatpush.msra.mxu0 %v126
  %258 = vmatpush.msra.mxu0 %v125
  %259 = vmatpush.msra.mxu0 %v124
  %260 = vmatpush.msra.mxu0 %v123
  %261 = vmatpush.msra.mxu0 %v122
  %262 = vmatpush.msra.mxu0 %v121
  %263 = vmatpush.msra.mxu0 %v120
  %264 = vmatpush.msra.mxu0 %v119
  %265 = vmatpush.msra.mxu0 %v118
  %266 = vmatpush.msra.mxu0 %v117
  %267 = vmatpush.msra.mxu0 %v116
  %268 = vmatpush.msra.mxu0 %v115
  %269 = vmatpush.msra.mxu0 %v114
  %270 = vmatpush.msra.mxu0 %v113
  %271 = vmatmul.f32.gmra.mxu0 %v250
  %v272 = vpop.f32.mrf.mxu0
  %v273 = vadd.f32 %v254, %v272
  %274 = vdwg.mxu0
  %v275 = vtanh.pop %v273
  %s276 = scalar_lea.vmem %s4, 40
  %277 = vst [vmem:[%s276] sm:$0xff] %v275
  %s278 = scalar_lea.vmem [#allocation3], 48
  %v279 = vld [vmem:[%s278] sm:$0xff]
  %280 = vmatpush.msra.mxu0 %v128
  %281 = vmatpush.msra.mxu0 %v127
  %282 = vmatpush.msra.mxu0 %v126
  %283 = vmatpush.msra.mxu0 %v125
  %284 = vmatpush.msra.mxu0 %v124
  %285 = vmatpush.msra.mxu0 %v123
  %286 = vmatpush.msra.mxu0 %v122
  %287 = vmatpush.msra.mxu0 %v121
  %288 = vmatpush.msra.mxu0 %v120
  %289 = vmatpush.msra.mxu0 %v119
  %290 = vmatpush.msra.mxu0 %v118
  %291 = vmatpush.msra.mxu0 %v117
  %292 = vmatpush.msra.mxu0 %v116
  %293 = vmatpush.msra.mxu0 %v115
  %294 = vmatpush.msra.mxu0 %v114
  %295 = vmatpush.msra.mxu0 %v113
  %296 = vmatmul.f32.gmra.mxu0 %v275
  %v297 = vpop.f32.mrf.mxu0
  %v298 = vadd.f32 %v279, %v297
  %299 = vdwg.mxu0
  %v300 = vtanh.pop %v298
  %s301 = scalar_lea.vmem %s4, 48
  %302 = vst [vmem:[%s301] sm:$0xff] %v300
  %s303 = scalar_lea.vmem [#allocation3], 56
  %v304 = vld [vmem:[%s303] sm:$0xff]
  %305 = vmatpush.msra.mxu0 %v128
  %306 = vmatpush.msra.mxu0 %v127
  %307 = vmatpush.msra.mxu0 %v126
  %308 = vmatpush.msra.mxu0 %v125
  %309 = vmatpush.msra.mxu0 %v124
  %310 = vmatpush.msra.mxu0 %v123
  %311 = vmatpush.msra.mxu0 %v122
  %312 = vmatpush.msra.mxu0 %v121
  %313 = vmatpush.msra.mxu0 %v120
  %314 = vmatpush.msra.mxu0 %v119
  %315 = vmatpush.msra.mxu0 %v118
  %316 = vmatpush.msra.mxu0 %v117
  %317 = vmatpush.msra.mxu0 %v116
  %318 = vmatpush.msra.mxu0 %v115
  %319 = vmatpush.msra.mxu0 %v114
  %320 = vmatpush.msra.mxu0 %v113
  %321 = vmatmul.f32.gmra.mxu0 %v300
  %v322 = vpop.f32.mrf.mxu0
  %v323 = vadd.f32 %v304, %v322
  %324 = vdwg.mxu0
  %v325 = vtanh.pop %v323
  %s326 = scalar_lea.vmem %s4, 56
  %327 = vst [vmem:[%s326] sm:$0xff] %v325
  %328 = vst [vmem:[#allocation2] sm:$0xff] %v325
  // Predicated region
  $region22: #{rnn_net_forward.2} parent=0 // pred_check
    _
  $region23: #{rnn_net_forward.2} parent=0 // pred_check_branch
    %330 = sbr.rel (0) target = $region25
  $region24: #{rnn_net_forward.2} parent=0 // pred_region
    _
  $region25: #{rnn_net_forward.2} parent=0 // pred_fallthru
    _
  // Predicated region
  $region26: #{rnn_net_forward.2} parent=0 // pred_check
    _
  $region27: #{rnn_net_forward.2} parent=0 // pred_check_branch
    %332 = sbr.rel (0) target = $region29
  $region28: #{rnn_net_forward.2} parent=0 // pred_region
    _
  $region29: #{rnn_net_forward.2} parent=0 // pred_fallthru
    _

</llo_original>
